<compile_context>
chip_gen: v7x
topology: tpu7x:2x2x1
jax: 0.10.0
libtpu: 0.0.40
codegen_flags: <defaults>
</compile_context>

<pallas_src>
import jax
import jax.numpy as jnp
from jax.experimental import pallas as pl
from jax.experimental.pallas import tpu as pltpu


def _round_up(x, m):
    return ((x + m - 1) // m) * m


def _pick_batch_tile(batch, requested):
    """Pick a batch tile: multiple of 8, <= padded batch, >=2 grid steps (v7x)."""
    tile = max(8, min(int(requested), _round_up(batch, 8)))
    tile = _round_up(tile, 8)
    if batch >= 64:
        # v7x has 2 TensorCores; keep at least 2 grid iterations so the
        # "parallel" batch axis can shard across both cores.
        tile = min(tile, max(8, _round_up(pl.cdiv(batch, 2), 8)))
    return tile


def make_mlp_kernel(num_layers: int, mxu_dtype):
    """Fused MLP kernel body: Linear (+ReLU) x num_layers.

    Ref order: x_ref, (w1, b1), (w2, b2), ..., o_ref.
    ReLU after every layer except the last (matches mlp() with output_mod=None).
    Matmuls run on the MXU in `mxu_dtype` with f32 accumulation; bias-add and
    ReLU are done in f32 (v5e has no bf16 VPU).
    """

    def kernel(*refs):
        x_ref = refs[0]
        o_ref = refs[-1]
        h = x_ref[...]                                   # already mxu_dtype
        for i in range(num_layers):
            w_ref = refs[1 + 2 * i]
            b_ref = refs[2 + 2 * i]
            acc = jnp.dot(h, w_ref[...], preferred_element_type=jnp.float32)
            acc = acc + b_ref[...]                       # f32 bias add
            if i < num_layers - 1:
                acc = jnp.maximum(acc, 0.0)              # f32 ReLU
                h = acc.astype(mxu_dtype)                # back to MXU dtype
            else:
                h = acc
        o_ref[...] = h.astype(o_ref.dtype)

    return kernel


def mlp_forward(x, params, *, batch_tile=256, mxu_dtype=jnp.bfloat16):
    """Runs the fused MLP Pallas kernel.

    Args:
      x: [B, input_dim] float32.
      params: list of (W, b) with W: [in, out] f32, b: [1, out] f32.
      batch_tile: requested batch tile (sweep 128/256/512).
      mxu_dtype: dtype fed to the MXU (bf16 default; f32 = exact semantics).
    Returns:
      [B, output_dim] with x.dtype.
    """
    B, in_dim = x.shape
    out_dim = params[-1][0].shape[1]
    out_pad = _round_up(out_dim, 128)       # lane-dense output slab
    num_layers = len(params)
    tile = _pick_batch_tile(B, batch_tile)
    out_dtype = x.dtype

    # One-time casts / padding in the wrapper (keeps per-grid-step VALU clean).
    xk = x.astype(mxu_dtype)
    kernel_params = []
    for li, (w, b) in enumerate(params):
        if li == num_layers - 1 and w.shape[1] != out_pad:
            w = jnp.pad(w, ((0, 0), (0, out_pad - out_dim)))
            b = jnp.pad(b, ((0, 0), (0, out_pad - out_dim)))
        kernel_params.append((w.astype(mxu_dtype), b.astype(jnp.float32)))

    flat_params = []
    in_specs = [pl.BlockSpec((tile, in_dim), lambda i: (i, 0))]
    for (w, b) in kernel_params:
        flat_params += [w, b]
        # Whole (tiny) weights/biases resident every grid step; constant
        # index_map means no re-DMA across steps. For large hidden dims,
        # single-buffer these with pipeline_mode=pl.Buffered(1).
        in_specs.append(pl.BlockSpec(w.shape, lambda i: (0, 0)))
        in_specs.append(pl.BlockSpec(b.shape, lambda i: (0, 0)))

    # Explicit VMEM budget: double-buffered x/out tiles + 2x resident params,
    # floored at 32 MiB, capped at 64 MiB (v7x physical VMEM is 64 MiB).
    vmem_bytes = 2 * tile * in_dim * jnp.dtype(mxu_dtype).itemsize
    vmem_bytes += 2 * tile * out_pad * jnp.dtype(out_dtype).itemsize
    for (w, b) in kernel_params:
        vmem_bytes += 2 * (w.size * w.dtype.itemsize + b.size * b.dtype.itemsize)
    vmem_limit = int(min(64 * 2**20, max(2 * vmem_bytes, 32 * 2**20)))

    out = pl.pallas_call(
        make_mlp_kernel(num_layers, mxu_dtype),
        out_shape=jax.ShapeDtypeStruct((B, out_pad), out_dtype),
        grid=(pl.cdiv(B, tile),),
        in_specs=in_specs,
        out_specs=pl.BlockSpec((tile, out_pad), lambda i: (i, 0)),
        compiler_params=pltpu.CompilerParams(
            dimension_semantics=("parallel",),
            vmem_limit_bytes=vmem_limit),
    )(xk, *flat_params)

    return out[:, :out_dim]


def orthogonal_init(key, out_dim, in_dim):
    """Mimics torch.nn.init.orthogonal_ on a weight of shape (out, in)."""
    rows, cols = out_dim, in_dim
    flat = jax.random.normal(key, (rows, cols), dtype=jnp.float32)
    if rows < cols:
        flat = flat.T
    q, r = jnp.linalg.qr(flat)
    d = jnp.sign(jnp.diagonal(r))
    q = q * d[None, :]
    if rows < cols:
        q = q.T
    return q  # shape (out, in)


def build_mlp_params(key, input_dim, hidden_dim, output_dim, hidden_depth):
    """Deterministic parameter construction matching mlp() + weight_init()."""
    if hidden_depth == 0:
        dims = [(input_dim, output_dim)]
    else:
        dims = [(input_dim, hidden_dim)]
        for _ in range(hidden_depth - 1):
            dims.append((hidden_dim, hidden_dim))
        dims.append((hidden_dim, output_dim))

    params = []
    for (d_in, d_out) in dims:
        key, sub = jax.random.split(key)
        w_torch = orthogonal_init(sub, d_out, d_in)       # (out, in), orthogonal
        w = jnp.asarray(w_torch.T, dtype=jnp.float32)     # (in, out) for x @ W
        b = jnp.zeros((1, d_out), dtype=jnp.float32)      # bias.data.fill_(0.0)
        params.append((w, b))
    return params


def mlp_reference(x, params):
    """Plain-JAX f32 reference of the same forward pass."""
    h = x
    for i, (w, b) in enumerate(params):
        h = h @ w + b
        if i < len(params) - 1:
            h = jnp.maximum(h, 0.0)
    return h


if __name__ == "__main__":
    # MLP-consistent shapes: input_dim=32, hidden_dim=32, output_dim=8, depth=2.
    # batch=512 so the 256-row tile gives a 2-step "parallel" grid (v7x 2 TCs).
    input_dim, hidden_dim, output_dim, hidden_depth = 32, 32, 8, 2
    batch = 512

    key = jax.random.PRNGKey(0)
    key_x, key_p = jax.random.split(key)

    x = jax.random.normal(key_x, (batch, input_dim), dtype=jnp.float32)
    params = build_mlp_params(key_p, input_dim, hidden_dim, output_dim,
                              hidden_depth)

    ref = jax.block_until_ready(mlp_reference(x, params))

    # Exact-semantics path (f32 end-to-end) — tight tolerance.
    out_f32 = jax.block_until_ready(
        mlp_forward(x, params, batch_tile=256, mxu_dtype=jnp.float32))
    assert out_f32.shape == (batch, output_dim)
    assert jnp.allclose(out_f32, ref, atol=1e-5, rtol=1e-5)

    # Performance path (bf16 MXU inputs, f32 accumulation / elementwise).
    out_bf16 = jax.block_until_ready(mlp_forward(x, params, batch_tile=256))
    assert out_bf16.shape == (batch, output_dim)
    assert jnp.allclose(out_bf16, ref, atol=5e-2, rtol=5e-2)

    print("KERNEL_OK")
</pallas_src>

<mosaic_0001>
module attributes {stable_mosaic.version = 11 : i64} {
  func.func @kernel(%arg0: i32, %arg1: memref<256x32xf32, #tpu.memory_space<vmem>>, %arg2: memref<32x32xf32, #tpu.memory_space<vmem>>, %arg3: memref<1x32xf32, #tpu.memory_space<vmem>>, %arg4: memref<32x32xf32, #tpu.memory_space<vmem>>, %arg5: memref<1x32xf32, #tpu.memory_space<vmem>>, %arg6: memref<32x128xf32, #tpu.memory_space<vmem>>, %arg7: memref<1x128xf32, #tpu.memory_space<vmem>>, %arg8: memref<256x128xf32, #tpu.memory_space<vmem>>) attributes {dimension_semantics = [#tpu.dimension_semantics<parallel>], iteration_bounds = array<i64: 2>, scalar_prefetch = 0 : i64, scratch_operands = 0 : i64, tpu.core_type = #tpu.core_type<tc>, window_params = [{transform_indices = @transform_0, window_bounds = array<i64: 256, 32>}, {pipeline_mode = #tpu.pipeline_mode<synchronous>, transform_indices = @transform_1, window_bounds = array<i64: 32, 32>}, {pipeline_mode = #tpu.pipeline_mode<synchronous>, transform_indices = @transform_2, window_bounds = array<i64: 1, 32>}, {pipeline_mode = #tpu.pipeline_mode<synchronous>, transform_indices = @transform_3, window_bounds = array<i64: 32, 32>}, {pipeline_mode = #tpu.pipeline_mode<synchronous>, transform_indices = @transform_4, window_bounds = array<i64: 1, 32>}, {pipeline_mode = #tpu.pipeline_mode<synchronous>, transform_indices = @transform_5, window_bounds = array<i64: 32, 128>}, {pipeline_mode = #tpu.pipeline_mode<synchronous>, transform_indices = @transform_6, window_bounds = array<i64: 1, 128>}, {transform_indices = @transform_7, window_bounds = array<i64: 256, 128>}]} {
    %c0 = arith.constant 0 : index
    %c0_0 = arith.constant 0 : index
    %0 = vector.load %arg1[%c0, %c0_0] : memref<256x32xf32, #tpu.memory_space<vmem>>, vector<256x32xf32>
    %c0_1 = arith.constant 0 : index
    %c0_2 = arith.constant 0 : index
    %1 = vector.load %arg2[%c0_1, %c0_2] : memref<32x32xf32, #tpu.memory_space<vmem>>, vector<32x32xf32>
    %cst = arith.constant dense<0.000000e+00> : vector<256x32xf32>
    %2 = tpu.matmul %0, %1, %cst {dimension_numbers = #tpu.dot_dimension_numbers<[1], [0], [0], [1], [0, 0, 1, 1], [], []>} : vector<256x32xf32>, vector<32x32xf32>, vector<256x32xf32> -> vector<256x32xf32>
    %c0_3 = arith.constant 0 : index
    %c0_4 = arith.constant 0 : index
    %3 = vector.load %arg3[%c0_3, %c0_4] : memref<1x32xf32, #tpu.memory_space<vmem>>, vector<1x32xf32>
    %4 = vector.broadcast %3 : vector<1x32xf32> to vector<256x32xf32>
    %5 = arith.addf %2, %4 : vector<256x32xf32>
    %cst_5 = arith.constant 0.000000e+00 : f32
    %6 = vector.broadcast %cst_5 : f32 to vector<256x32xf32>
    %7 = arith.maximumf %5, %6 : vector<256x32xf32>
    %c0_6 = arith.constant 0 : index
    %c0_7 = arith.constant 0 : index
    %8 = vector.load %arg4[%c0_6, %c0_7] : memref<32x32xf32, #tpu.memory_space<vmem>>, vector<32x32xf32>
    %cst_8 = arith.constant dense<0.000000e+00> : vector<256x32xf32>
    %9 = tpu.matmul %7, %8, %cst_8 {dimension_numbers = #tpu.dot_dimension_numbers<[1], [0], [0], [1], [0, 0, 1, 1], [], []>} : vector<256x32xf32>, vector<32x32xf32>, vector<256x32xf32> -> vector<256x32xf32>
    %c0_9 = arith.constant 0 : index
    %c0_10 = arith.constant 0 : index
    %10 = vector.load %arg5[%c0_9, %c0_10] : memref<1x32xf32, #tpu.memory_space<vmem>>, vector<1x32xf32>
    %11 = vector.broadcast %10 : vector<1x32xf32> to vector<256x32xf32>
    %12 = arith.addf %9, %11 : vector<256x32xf32>
    %cst_11 = arith.constant 0.000000e+00 : f32
    %13 = vector.broadcast %cst_11 : f32 to vector<256x32xf32>
    %14 = arith.maximumf %12, %13 : vector<256x32xf32>
    %c0_12 = arith.constant 0 : index
    %c0_13 = arith.constant 0 : index
    %15 = vector.load %arg6[%c0_12, %c0_13] : memref<32x128xf32, #tpu.memory_space<vmem>>, vector<32x128xf32>
    %cst_14 = arith.constant dense<0.000000e+00> : vector<256x128xf32>
    %16 = tpu.matmul %14, %15, %cst_14 {dimension_numbers = #tpu.dot_dimension_numbers<[1], [0], [0], [1], [0, 0, 1, 1], [], []>} : vector<256x32xf32>, vector<32x128xf32>, vector<256x128xf32> -> vector<256x128xf32>
    %c0_15 = arith.constant 0 : index
    %c0_16 = arith.constant 0 : index
    %17 = vector.load %arg7[%c0_15, %c0_16] : memref<1x128xf32, #tpu.memory_space<vmem>>, vector<1x128xf32>
    %18 = vector.broadcast %17 : vector<1x128xf32> to vector<256x128xf32>
    %19 = arith.addf %16, %18 : vector<256x128xf32>
    %c0_17 = arith.constant 0 : index
    %c0_18 = arith.constant 0 : index
    %20 = vector.load %arg8[%c0_17, %c0_18] : memref<256x128xf32, #tpu.memory_space<vmem>>, vector<256x128xf32>
    tpu.vector_store %arg8[%c0_17, %c0_18], %19 {strides = array<i32>} : memref<256x128xf32, #tpu.memory_space<vmem>>, vector<256x128xf32>,
    return
  }
  func.func @transform_0(%arg0: i32) -> (i32, i32) {
    %c0_i32 = arith.constant 0 : i32
    %c0_i32_0 = arith.constant 0 : i32
    return %arg0, %c0_i32 : i32, i32
  }
  func.func @transform_1(%arg0: i32) -> (i32, i32) {
    %c0_i32 = arith.constant 0 : i32
    %c0_i32_0 = arith.constant 0 : i32
    %c0_i32_1 = arith.constant 0 : i32
    return %c0_i32, %c0_i32_0 : i32, i32
  }
  func.func @transform_2(%arg0: i32) -> (i32, i32) {
    %c0_i32 = arith.constant 0 : i32
    %c0_i32_0 = arith.constant 0 : i32
    %c0_i32_1 = arith.constant 0 : i32
    return %c0_i32, %c0_i32_0 : i32, i32
  }
  func.func @transform_3(%arg0: i32) -> (i32, i32) {
    %c0_i32 = arith.constant 0 : i32
    %c0_i32_0 = arith.constant 0 : i32
    %c0_i32_1 = arith.constant 0 : i32
    return %c0_i32, %c0_i32_0 : i32, i32
  }
  func.func @transform_4(%arg0: i32) -> (i32, i32) {
    %c0_i32 = arith.constant 0 : i32
    %c0_i32_0 = arith.constant 0 : i32
    %c0_i32_1 = arith.constant 0 : i32
    return %c0_i32, %c0_i32_0 : i32, i32
  }
  func.func @transform_5(%arg0: i32) -> (i32, i32) {
    %c0_i32 = arith.constant 0 : i32
    %c0_i32_0 = arith.constant 0 : i32
    %c0_i32_1 = arith.constant 0 : i32
    return %c0_i32, %c0_i32_0 : i32, i32
  }
  func.func @transform_6(%arg0: i32) -> (i32, i32) {
    %c0_i32 = arith.constant 0 : i32
    %c0_i32_0 = arith.constant 0 : i32
    %c0_i32_1 = arith.constant 0 : i32
    return %c0_i32, %c0_i32_0 : i32, i32
  }
  func.func @transform_7(%arg0: i32) -> (i32, i32) {
    %c0_i32 = arith.constant 0 : i32
    %c0_i32_0 = arith.constant 0 : i32
    return %arg0, %c0_i32 : i32, i32
  }
}

</mosaic_0001>

<llo_original>
// kernel: tpu_custom_call.1
$region0: #{tpu_custom_call.1}
  #allocation0 [shape = 'u32[]', space=smem, size = 0x4, offset = 0x4, fixed_abs, tag = 'smem constant byte address 0x4 - core index']
  #allocation1 [shape = 'u32[144,128]{1,0:T(1,128)}', space=vmem, size = 0x12000, scoped, tag = 'internal scratch']
  %s0 = inlined_call_operand.vmem [shape: f32[512,32], index: 0, kind: input, shape index: {}]
  %s1 = inlined_call_operand.vmem [shape: f32[32,32], index: 1, kind: input, shape index: {}]
  %s2 = inlined_call_operand.vmem [shape: f32[1,32], index: 2, kind: input, shape index: {}]
  %s3 = inlined_call_operand.vmem [shape: f32[32,32], index: 3, kind: input, shape index: {}]
  %s4 = inlined_call_operand.vmem [shape: f32[1,32], index: 4, kind: input, shape index: {}]
  %s5 = inlined_call_operand.vmem [shape: f32[32,128], index: 5, kind: input, shape index: {}]
  %s6 = inlined_call_operand.vmem [shape: f32[1,128], index: 6, kind: input, shape index: {}]
  %s7 = inlined_call_operand.hbm [shape: f32[512,128], index: 7, kind: output, shape index: {}]
  %s8 = sld [smem:[#allocation0]]
  $region61: #{tpu_custom_call.1} parent=0
    _
  %s10 = ssub.s32 1, %s8
  %s11 = scalar_select 0, %s10, %s8
  $region1: #{tpu_custom_call.1} parent=0
    #allocation2 [shape = 'u8[262144]{0}', space=vmem, size = 0x40000, scoped, tag = 'output window, operand 0']
    #allocation3 [shape = 's32[2]{0}', space=sflag, size = 0x8, scoped, tag = 'scoped memory for tpu_custom_call.1']
    %12 = vsyncpa [#allocation3], 0
    %s13 = scalar_lea.sflag [#allocation3], 1
    %14 = vsyncpa %s13, 0
    loop: start=0, step=1, limit=4
    $region2: #{tpu_custom_call.1} parent=1 // loop_pre_header
      _
    $region3: #{tpu_custom_call.1} parent=1 // loop_header
      %s16 = sphi 0, %s20
      %p17 = scmp.ge.s32.totalorder %s16, 4
      %s26 = sphi 0, %s28
      %s29 = sphi 0, %s26
      %s30 = sphi 0, %s29
      %s46 = sphi 0, %s30
      %s50 = sphi 0, %s50
      %s52 = sphi 0, %s50
      %s53 = sphi 0, %s52
      %s67 = sphi 0, %s53
      %s71 = sphi 0, %s71
      %s73 = sphi 0, %s71
      %s74 = sphi 0, %s73
      %s88 = sphi 0, %s74
      %s92 = sphi 0, %s92
      %s94 = sphi 0, %s92
      %s95 = sphi 0, %s94
      %s109 = sphi 0, %s95
      %s113 = sphi 0, %s113
      %s115 = sphi 0, %s113
      %s116 = sphi 0, %s115
      %s130 = sphi 0, %s116
      %s134 = sphi 0, %s134
      %s136 = sphi 0, %s134
      %s137 = sphi 0, %s136
      %s151 = sphi 0, %s137
      %s155 = sphi 0, %s155
      %s157 = sphi 0, %s155
      %s158 = sphi 0, %s157
      %s172 = sphi 0, %s158
      %s178 = sphi 0, %s180
      %s181 = sphi 0, %s178
      %s182 = sphi 0, %s181
      %s198 = sphi 0, %s182
    $region4: #{tpu_custom_call.1} parent=1 // loop_header_branch
      %19 = sbr.rel (%p17) target = $region8
    $region5: #{tpu_custom_call.1} parent=1 // loop_body
      %s21 = ssub.s32 %s16, 1
      %s22 = ssub.s32 %s16, 2
      %s23 = sadd.s32 %s16, 1
      %s24 = ssub.s32 %s16, %s23
      %p25 = scmp.eq.s32.totalorder %s24, 0
      %s27 = sadd.s32 %s26, 1
      %s28 = scalar_select %p25, %s26, %s27
      %p31 = pneg %p25
      %p32 = scmp.eq.s32.totalorder %s16, 1
      %p33 = por %p31, %p32
      %p34 = scmp.ne.s32.totalorder %s26, %s29
      %p35 = scmp.eq.s32.totalorder %s16, 0
      %p36 = por %p34, %p35
      %p37 = scmp.ne.s32.totalorder %s26, %s29
      %p38 = scmp.eq.s32.totalorder %s21, 1
      %p39 = por %p37, %p38
      %p40 = scmp.ne.s32.totalorder %s29, %s30
      %p41 = scmp.eq.s32.totalorder %s21, 0
      %p42 = por %p40, %p41
      %p43 = scmp.ne.s32.totalorder %s29, %s30
      %p44 = scmp.eq.s32.totalorder %s22, 1
      %p45 = por %p43, %p44
      %p47 = scmp.ne.s32.totalorder %s30, %s46
      %p48 = scmp.eq.s32.totalorder %s22, 0
      %p49 = por %p47, %p48
      %s51 = sadd.s32 %s50, 1
      %p54 = scmp.eq.s32.totalorder %s16, 1
      %p55 = scmp.ne.s32.totalorder %s50, %s52
      %p56 = scmp.eq.s32.totalorder %s16, 0
      %p57 = por %p55, %p56
      %p58 = scmp.ne.s32.totalorder %s50, %s52
      %p59 = scmp.eq.s32.totalorder %s21, 1
      %p60 = por %p58, %p59
      %p61 = scmp.ne.s32.totalorder %s52, %s53
      %p62 = scmp.eq.s32.totalorder %s21, 0
      %p63 = por %p61, %p62
      %p64 = scmp.ne.s32.totalorder %s52, %s53
      %p65 = scmp.eq.s32.totalorder %s22, 1
      %p66 = por %p64, %p65
      %p68 = scmp.ne.s32.totalorder %s53, %s67
      %p69 = scmp.eq.s32.totalorder %s22, 0
      %p70 = por %p68, %p69
      %s72 = sadd.s32 %s71, 1
      %p75 = scmp.eq.s32.totalorder %s16, 1
      %p76 = scmp.ne.s32.totalorder %s71, %s73
      %p77 = scmp.eq.s32.totalorder %s16, 0
      %p78 = por %p76, %p77
      %p79 = scmp.ne.s32.totalorder %s71, %s73
      %p80 = scmp.eq.s32.totalorder %s21, 1
      %p81 = por %p79, %p80
      %p82 = scmp.ne.s32.totalorder %s73, %s74
      %p83 = scmp.eq.s32.totalorder %s21, 0
      %p84 = por %p82, %p83
      %p85 = scmp.ne.s32.totalorder %s73, %s74
      %p86 = scmp.eq.s32.totalorder %s22, 1
      %p87 = por %p85, %p86
      %p89 = scmp.ne.s32.totalorder %s74, %s88
      %p90 = scmp.eq.s32.totalorder %s22, 0
      %p91 = por %p89, %p90
      %s93 = sadd.s32 %s92, 1
      %p96 = scmp.eq.s32.totalorder %s16, 1
      %p97 = scmp.ne.s32.totalorder %s92, %s94
      %p98 = scmp.eq.s32.totalorder %s16, 0
      %p99 = por %p97, %p98
      %p100 = scmp.ne.s32.totalorder %s92, %s94
      %p101 = scmp.eq.s32.totalorder %s21, 1
      %p102 = por %p100, %p101
      %p103 = scmp.ne.s32.totalorder %s94, %s95
      %p104 = scmp.eq.s32.totalorder %s21, 0
      %p105 = por %p103, %p104
      %p106 = scmp.ne.s32.totalorder %s94, %s95
      %p107 = scmp.eq.s32.totalorder %s22, 1
      %p108 = por %p106, %p107
      %p110 = scmp.ne.s32.totalorder %s95, %s109
      %p111 = scmp.eq.s32.totalorder %s22, 0
      %p112 = por %p110, %p111
      %s114 = sadd.s32 %s113, 1
      %p117 = scmp.eq.s32.totalorder %s16, 1
      %p118 = scmp.ne.s32.totalorder %s113, %s115
      %p119 = scmp.eq.s32.totalorder %s16, 0
      %p120 = por %p118, %p119
      %p121 = scmp.ne.s32.totalorder %s113, %s115
      %p122 = scmp.eq.s32.totalorder %s21, 1
      %p123 = por %p121, %p122
      %p124 = scmp.ne.s32.totalorder %s115, %s116
      %p125 = scmp.eq.s32.totalorder %s21, 0
      %p126 = por %p124, %p125
      %p127 = scmp.ne.s32.totalorder %s115, %s116
      %p128 = scmp.eq.s32.totalorder %s22, 1
      %p129 = por %p127, %p128
      %p131 = scmp.ne.s32.totalorder %s116, %s130
      %p132 = scmp.eq.s32.totalorder %s22, 0
      %p133 = por %p131, %p132
      %s135 = sadd.s32 %s134, 1
      %p138 = scmp.eq.s32.totalorder %s16, 1
      %p139 = scmp.ne.s32.totalorder %s134, %s136
      %p140 = scmp.eq.s32.totalorder %s16, 0
      %p141 = por %p139, %p140
      %p142 = scmp.ne.s32.totalorder %s134, %s136
      %p143 = scmp.eq.s32.totalorder %s21, 1
      %p144 = por %p142, %p143
      %p145 = scmp.ne.s32.totalorder %s136, %s137
      %p146 = scmp.eq.s32.totalorder %s21, 0
      %p147 = por %p145, %p146
      %p148 = scmp.ne.s32.totalorder %s136, %s137
      %p149 = scmp.eq.s32.totalorder %s22, 1
      %p150 = por %p148, %p149
      %p152 = scmp.ne.s32.totalorder %s137, %s151
      %p153 = scmp.eq.s32.totalorder %s22, 0
      %p154 = por %p152, %p153
      %s156 = sadd.s32 %s155, 1
      %p159 = scmp.eq.s32.totalorder %s16, 1
      %p160 = scmp.ne.s32.totalorder %s155, %s157
      %p161 = scmp.eq.s32.totalorder %s16, 0
      %p162 = por %p160, %p161
      %p163 = scmp.ne.s32.totalorder %s155, %s157
      %p164 = scmp.eq.s32.totalorder %s21, 1
      %p165 = por %p163, %p164
      %p166 = scmp.ne.s32.totalorder %s157, %s158
      %p167 = scmp.eq.s32.totalorder %s21, 0
      %p168 = por %p166, %p167
      %p169 = scmp.ne.s32.totalorder %s157, %s158
      %p170 = scmp.eq.s32.totalorder %s22, 1
      %p171 = por %p169, %p170
      %p173 = scmp.ne.s32.totalorder %s158, %s172
      %p174 = scmp.eq.s32.totalorder %s22, 0
      %p175 = por %p173, %p174
      %s176 = ssub.s32 %s16, %s23
      %p177 = scmp.eq.s32.totalorder %s176, 0
      %s179 = sadd.s32 %s178, 1
      %s180 = scalar_select %p177, %s178, %s179
      %p183 = pneg %p177
      %p184 = scmp.eq.s32.totalorder %s16, 1
      %p185 = por %p183, %p184
      %p186 = scmp.ne.s32.totalorder %s178, %s181
      %p187 = scmp.eq.s32.totalorder %s16, 0
      %p188 = por %p186, %p187
      %p189 = scmp.ne.s32.totalorder %s178, %s181
      %p190 = scmp.eq.s32.totalorder %s21, 1
      %p191 = por %p189, %p190
      %p192 = scmp.ne.s32.totalorder %s181, %s182
      %p193 = scmp.eq.s32.totalorder %s21, 0
      %p194 = por %p192, %p193
      %p195 = scmp.ne.s32.totalorder %s181, %s182
      %p196 = scmp.eq.s32.totalorder %s22, 1
      %p197 = por %p195, %p196
      %p199 = scmp.ne.s32.totalorder %s182, %s198
      %p200 = scmp.eq.s32.totalorder %s22, 0
      %p201 = por %p199, %p200
      %p202 = scmp.le.s32.totalorder 1, %s16
      %p203 = scmp.lt.s32.totalorder %s16, 3
      %p204 = pnand %p202, %p203
      %p205 = pneg %p204
      // Predicated region
      $region9: #{tpu_custom_call.1} parent=5 // pred_check
        _
      $region10: #{tpu_custom_call.1} parent=5 // pred_check_branch
        %207 = sbr.rel (%p204) target = $region12
      $region11: #{tpu_custom_call.1} parent=5 // pred_region
        %s208 = ssub.s32 %s16, 1
        // Predicated region
        $region13: #{tpu_custom_call.1} parent=11 // pred_check
          %p209 = pneg %p63
        $region14: #{tpu_custom_call.1} parent=11 // pred_check_branch
          %211 = sbr.rel (%p209) target = $region16
        $region15: #{tpu_custom_call.1} parent=11 // pred_region
          _
        $region16: #{tpu_custom_call.1} parent=11 // pred_fallthru
          _
        // Predicated region
        $region17: #{tpu_custom_call.1} parent=11 // pred_check
          %p212 = pneg %p84
        $region18: #{tpu_custom_call.1} parent=11 // pred_check_branch
          %214 = sbr.rel (%p212) target = $region20
        $region19: #{tpu_custom_call.1} parent=11 // pred_region
          _
        $region20: #{tpu_custom_call.1} parent=11 // pred_fallthru
          _
        // Predicated region
        $region21: #{tpu_custom_call.1} parent=11 // pred_check
          %p215 = pneg %p105
        $region22: #{tpu_custom_call.1} parent=11 // pred_check_branch
          %217 = sbr.rel (%p215) target = $region24
        $region23: #{tpu_custom_call.1} parent=11 // pred_region
          _
        $region24: #{tpu_custom_call.1} parent=11 // pred_fallthru
          _
        // Predicated region
        $region25: #{tpu_custom_call.1} parent=11 // pred_check
          %p218 = pneg %p126
        $region26: #{tpu_custom_call.1} parent=11 // pred_check_branch
          %220 = sbr.rel (%p218) target = $region28
        $region27: #{tpu_custom_call.1} parent=11 // pred_region
          _
        $region28: #{tpu_custom_call.1} parent=11 // pred_fallthru
          _
        // Predicated region
        $region29: #{tpu_custom_call.1} parent=11 // pred_check
          %p221 = pneg %p147
        $region30: #{tpu_custom_call.1} parent=11 // pred_check_branch
          %223 = sbr.rel (%p221) target = $region32
        $region31: #{tpu_custom_call.1} parent=11 // pred_region
          _
        $region32: #{tpu_custom_call.1} parent=11 // pred_fallthru
          _
        // Predicated region
        $region33: #{tpu_custom_call.1} parent=11 // pred_check
          %p224 = pneg %p168
        $region34: #{tpu_custom_call.1} parent=11 // pred_check_branch
          %226 = sbr.rel (%p224) target = $region36
        $region35: #{tpu_custom_call.1} parent=11 // pred_region
          _
        $region36: #{tpu_custom_call.1} parent=11 // pred_fallthru
          _
      $region12: #{tpu_custom_call.1} parent=5 // pred_fallthru
        _
      %p227 = scmp.lt.s32.totalorder %s16, 2
      // Predicated region
      $region37: #{tpu_custom_call.1} parent=5 // pred_check
        %p228 = pneg %p227
      $region38: #{tpu_custom_call.1} parent=5 // pred_check_branch
        %230 = sbr.rel (%p228) target = $region40
      $region39: #{tpu_custom_call.1} parent=5 // pred_region
        // Predicated region
        $region41: #{tpu_custom_call.1} parent=39 // pred_check
          %p231 = pneg %p36
        $region42: #{tpu_custom_call.1} parent=39 // pred_check_branch
          %233 = sbr.rel (%p231) target = $region44
        $region43: #{tpu_custom_call.1} parent=39 // pred_region
          %s234 = smul.u32 32, %s16
          %p235 = scmp.lt.s32.totalorder %s234, 63
          %s236 = scalar_select %p235, %s234, 63
          %s237 = smul.addr %s236, 8
          %s238 = scalar_lea.vmem %s0, %s237
          %s239 = smul.u32 32, %s16
        $region44: #{tpu_custom_call.1} parent=39 // pred_fallthru
          _
      $region40: #{tpu_custom_call.1} parent=5 // pred_fallthru
        _
      %p240 = scmp.le.s32.totalorder 1, %s16
      %p241 = scmp.lt.s32.totalorder %s16, 3
      %p242 = pnand %p240, %p241
      %p243 = pneg %p242
      // Predicated region
      $region45: #{tpu_custom_call.1} parent=5 // pred_check
        _
      $region46: #{tpu_custom_call.1} parent=5 // pred_check_branch
        %245 = sbr.rel (%p242) target = $region48
      $region47: #{tpu_custom_call.1} parent=5 // pred_region
        %s246 = ssub.s32 %s16, 1
        %s247 = smul.u32 32, %s21
        %p248 = scmp.lt.s32.totalorder %s247, 63
        %s249 = scalar_select %p248, %s247, 63
        %s250 = smul.addr %s249, 8
        %s251 = scalar_lea.vmem %s0, %s250
        %p252 = pneg %p42
        %p253 = pneg %p39
        %p254 = pneg %p63
        %p255 = pneg %p60
        %p256 = pneg %p84
        %p257 = pneg %p81
        %p258 = pneg %p105
        %p259 = pneg %p102
        %p260 = pneg %p126
        %p261 = pneg %p123
        %p262 = pneg %p147
        %p263 = pneg %p144
        %p264 = pneg %p168
        %p265 = pneg %p165
        %p266 = pneg %p194
        %p267 = pneg %p191
        %s268 = sand.u32 %s181, 1
        %s269 = scalar_lea.sflag [#allocation3], %s268
        %s270 = sand.u32 %s181, 1
        %s271 = smul.addr %s270, 256
        %s272 = scalar_lea.vmem [#allocation2], %s271
        %s273 = smul.u32 32, %s21
        %p274 = scmp.lt.s32.totalorder %s273, 63
        %s275 = scalar_select %p274, %s273, 63
        %s276 = smul.addr %s275, 8
        %s277 = scalar_lea.vmem %s0, %s276
        %s278 = smul.u32 32, %s21
        %s279 = smul.u32 32, %s21
        %v280 = vld [vmem:[%s277] sm:$0xff]
        %v281 = vld [vmem:[%s277 + $0x8] sm:$0xff]
        %v282 = vld [vmem:[%s277 + $0x10] sm:$0xff]
        %v283 = vld [vmem:[%s277 + $0x18] sm:$0xff]
        %v284 = vld [vmem:[%s277 + $0x20] sm:$0xff]
        %v285 = vld [vmem:[%s277 + $0x28] sm:$0xff]
        %v286 = vld [vmem:[%s277 + $0x30] sm:$0xff]
        %v287 = vld [vmem:[%s277 + $0x38] sm:$0xff]
        %v288 = vld [vmem:[%s277 + $0x40] sm:$0xff]
        %v289 = vld [vmem:[%s277 + $0x48] sm:$0xff]
        %v290 = vld [vmem:[%s277 + $0x50] sm:$0xff]
        %v291 = vld [vmem:[%s277 + $0x58] sm:$0xff]
        %v292 = vld [vmem:[%s277 + $0x60] sm:$0xff]
        %v293 = vld [vmem:[%s277 + $0x68] sm:$0xff]
        %v294 = vld [vmem:[%s277 + $0x70] sm:$0xff]
        %v295 = vld [vmem:[%s277 + $0x78] sm:$0xff]
        %v296 = vld [vmem:[%s277 + $0x80] sm:$0xff]
        %v297 = vld [vmem:[%s277 + $0x88] sm:$0xff]
        %v298 = vld [vmem:[%s277 + $0x90] sm:$0xff]
        %v299 = vld [vmem:[%s277 + $0x98] sm:$0xff]
        %v300 = vld [vmem:[%s277 + $0xa0] sm:$0xff]
        %v301 = vld [vmem:[%s277 + $0xa8] sm:$0xff]
        %v302 = vld [vmem:[%s277 + $0xb0] sm:$0xff]
        %v303 = vld [vmem:[%s277 + $0xb8] sm:$0xff]
        %v304 = vld [vmem:[%s277 + $0xc0] sm:$0xff]
        %v305 = vld [vmem:[%s277 + $0xc8] sm:$0xff]
        %v306 = vld [vmem:[%s277 + $0xd0] sm:$0xff]
        %v307 = vld [vmem:[%s277 + $0xd8] sm:$0xff]
        %v308 = vld [vmem:[%s277 + $0xe0] sm:$0xff]
        %v309 = vld [vmem:[%s277 + $0xe8] sm:$0xff]
        %v310 = vld [vmem:[%s277 + $0xf0] sm:$0xff]
        %v311 = vld [vmem:[%s277 + $0xf8] sm:$0xff]
        %v312 = vld [vmem:[%s1] sm:$0xff]
        %v313 = vld [vmem:[%s1 + $0x8] sm:$0xff]
        %v314 = vld [vmem:[%s1 + $0x10] sm:$0xff]
        %v315 = vld [vmem:[%s1 + $0x18] sm:$0xff]
        %v316 = vld [vmem:[%s2] sm:$0x1]
        %v318 = vlaneseq
        %v319 = vshrl.u32 %v318, 7
        %v320 = vsub.s32 0, %v319
        %v321 = vrot.slane %v316, %v320
        %vm323 = vcmask 261120
        %v325 = vsel %vm323, %v280, 0
        %v328 = vsel %vm323, %v281, 0
        %v331 = vsel %vm323, %v282, 0
        %v334 = vsel %vm323, %v283, 0
        %v337 = vsel %vm323, %v284, 0
        %v340 = vsel %vm323, %v285, 0
        %v343 = vsel %vm323, %v286, 0
        %v346 = vsel %vm323, %v287, 0
        %v349 = vsel %vm323, %v288, 0
        %v352 = vsel %vm323, %v289, 0
        %v355 = vsel %vm323, %v290, 0
        %v358 = vsel %vm323, %v291, 0
        %v361 = vsel %vm323, %v292, 0
        %v364 = vsel %vm323, %v293, 0
        %v367 = vsel %vm323, %v294, 0
        %v370 = vsel %vm323, %v295, 0
        %v373 = vsel %vm323, %v296, 0
        %v376 = vsel %vm323, %v297, 0
        %v379 = vsel %vm323, %v298, 0
        %v382 = vsel %vm323, %v299, 0
        %v385 = vsel %vm323, %v300, 0
        %v388 = vsel %vm323, %v301, 0
        %v391 = vsel %vm323, %v302, 0
        %v394 = vsel %vm323, %v303, 0
        %v397 = vsel %vm323, %v304, 0
        %v400 = vsel %vm323, %v305, 0
        %v403 = vsel %vm323, %v306, 0
        %v406 = vsel %vm323, %v307, 0
        %v409 = vsel %vm323, %v308, 0
        %v412 = vsel %vm323, %v309, 0
        %v415 = vsel %vm323, %v310, 0
        %v418 = vsel %vm323, %v311, 0
        %420 = vmatprep.subr.mxu0 0.0
        %421 = vmatpush1.msra.mxu0 %v312
        %422 = vmatprep.subr.mxu0 0.0
        %423 = vmatpush1.msra.mxu0 %v313
        %424 = vmatprep.subr.mxu0 0.0
        %425 = vmatpush1.msra.mxu0 %v314
        %426 = vmatprep.subr.mxu0 0.0
        %427 = vmatpush1.msra.mxu0 %v315
        %428 = vmatprep.subr.mxu0 0.0
        %429 = vmatpush1.msra.mxu0 0.0
        %430 = vmatprep.subr.mxu0 0.0
        %431 = vmatpush1.msra.mxu0 0.0
        %432 = vmatprep.subr.mxu0 0.0
        %433 = vmatpush1.msra.mxu0 0.0
        %434 = vmatprep.subr.mxu0 0.0
        %435 = vmatpush1.msra.mxu0 0.0
        %436 = vmatprep.subr.mxu0 0.0
        %437 = vmatpush1.msra.mxu0 0.0
        %438 = vmatprep.subr.mxu0 0.0
        %439 = vmatpush1.msra.mxu0 0.0
        %440 = vmatprep.subr.mxu0 0.0
        %441 = vmatpush1.msra.mxu0 0.0
        %442 = vmatprep.subr.mxu0 0.0
        %443 = vmatpush1.msra.mxu0 0.0
        %444 = vmatprep.subr.mxu0 0.0
        %445 = vmatpush1.msra.mxu0 0.0
        %446 = vmatprep.subr.mxu0 0.0
        %447 = vmatpush1.msra.mxu0 0.0
        %448 = vmatprep.subr.mxu0 0.0
        %449 = vmatpush1.msra.mxu0 0.0
        %450 = vmatprep.subr.mxu0 0.0
        %451 = vmatpush1.msra.mxu0 0.0
        %452 = vmatprep.subr.mxu0 0.0
        %453 = vmatpush1.msra.mxu0 0.0
        %454 = vmatprep.subr.mxu0 0.0
        %455 = vmatpush1.msra.mxu0 0.0
        %456 = vmatprep.subr.mxu0 0.0
        %457 = vmatpush1.msra.mxu0 0.0
        %458 = vmatprep.subr.mxu0 0.0
        %459 = vmatpush1.msra.mxu0 0.0
        %460 = vmatprep.subr.mxu0 0.0
        %461 = vmatpush1.msra.mxu0 0.0
        %462 = vmatprep.subr.mxu0 0.0
        %463 = vmatpush1.msra.mxu0 0.0
        %464 = vmatprep.subr.mxu0 0.0
        %465 = vmatpush1.msra.mxu0 0.0
        %466 = vmatprep.subr.mxu0 0.0
        %467 = vmatpush1.msra.mxu0 0.0
        %468 = vmatprep.subr.mxu0 0.0
        %469 = vmatpush1.msra.mxu0 0.0
        %470 = vmatprep.subr.mxu0 0.0
        %471 = vmatpush1.msra.mxu0 0.0
        %472 = vmatprep.subr.mxu0 0.0
        %473 = vmatpush1.msra.mxu0 0.0
        %474 = vmatprep.subr.mxu0 0.0
        %475 = vmatpush1.msra.mxu0 0.0
        %476 = vmatprep.subr.mxu0 0.0
        %477 = vmatpush1.msra.mxu0 0.0
        %478 = vmatprep.subr.mxu0 0.0
        %479 = vmatpush1.msra.mxu0 0.0
        %480 = vmatprep.subr.mxu0 0.0
        %481 = vmatpush1.msra.mxu0 0.0
        %482 = vmatprep.subr.mxu0 0.0
        %483 = vmatpush1.msra.mxu0 0.0
        %484 = vmatprep.mubr.f32.mxu0 0.0
        %485 = vmatmul.mubr.f32.gmra.mrb[0].mxu0 %v325
        %v486 = vpop.f32.mrb[0].mxu0
        %v487 = vadd.f32 %v321, %v486
        %v488 = vpop.f32.mrb[0].mxu0
        %489 = vmatprep.mubr.f32.mxu0 0.0
        %490 = vmatmul.mubr.f32.gmra.mrb[0].mxu0 %v328
        %v491 = vpop.f32.mrb[0].mxu0
        %v492 = vadd.f32 %v321, %v491
        %v493 = vpop.f32.mrb[0].mxu0
        %494 = vmatprep.mubr.f32.mxu0 0.0
        %495 = vmatmul.mubr.f32.gmra.mrb[0].mxu0 %v331
        %v496 = vpop.f32.mrb[0].mxu0
        %v497 = vadd.f32 %v321, %v496
        %v498 = vpop.f32.mrb[0].mxu0
        %499 = vmatprep.mubr.f32.mxu0 0.0
        %500 = vmatmul.mubr.f32.gmra.mrb[0].mxu0 %v334
        %v501 = vpop.f32.mrb[0].mxu0
        %v502 = vadd.f32 %v321, %v501
        %v503 = vpop.f32.mrb[0].mxu0
        %504 = vmatprep.mubr.f32.mxu0 0.0
        %505 = vmatmul.mubr.f32.gmra.mrb[0].mxu0 %v337
        %v506 = vpop.f32.mrb[0].mxu0
        %v507 = vadd.f32 %v321, %v506
        %v508 = vpop.f32.mrb[0].mxu0
        %509 = vmatprep.mubr.f32.mxu0 0.0
        %510 = vmatmul.mubr.f32.gmra.mrb[0].mxu0 %v340
        %v511 = vpop.f32.mrb[0].mxu0
        %v512 = vadd.f32 %v321, %v511
        %v513 = vpop.f32.mrb[0].mxu0
        %514 = vmatprep.mubr.f32.mxu0 0.0
        %515 = vmatmul.mubr.f32.gmra.mrb[0].mxu0 %v343
        %v516 = vpop.f32.mrb[0].mxu0
        %v517 = vadd.f32 %v321, %v516
        %v518 = vpop.f32.mrb[0].mxu0
        %519 = vmatprep.mubr.f32.mxu0 0.0
        %520 = vmatmul.mubr.f32.gmra.mrb[0].mxu0 %v346
        %v521 = vpop.f32.mrb[0].mxu0
        %v522 = vadd.f32 %v321, %v521
        %v523 = vpop.f32.mrb[0].mxu0
        %524 = vmatprep.mubr.f32.mxu0 0.0
        %525 = vmatmul.mubr.f32.gmra.mrb[0].mxu0 %v349
        %v526 = vpop.f32.mrb[0].mxu0
        %v527 = vadd.f32 %v321, %v526
        %v528 = vpop.f32.mrb[0].mxu0
        %529 = vmatprep.mubr.f32.mxu0 0.0
        %530 = vmatmul.mubr.f32.gmra.mrb[0].mxu0 %v352
        %v531 = vpop.f32.mrb[0].mxu0
        %v532 = vadd.f32 %v321, %v531
        %v533 = vpop.f32.mrb[0].mxu0
        %534 = vmatprep.mubr.f32.mxu0 0.0
        %535 = vmatmul.mubr.f32.gmra.mrb[0].mxu0 %v355
        %v536 = vpop.f32.mrb[0].mxu0
        %v537 = vadd.f32 %v321, %v536
        %v538 = vpop.f32.mrb[0].mxu0
        %539 = vmatprep.mubr.f32.mxu0 0.0
        %540 = vmatmul.mubr.f32.gmra.mrb[0].mxu0 %v358
        %v541 = vpop.f32.mrb[0].mxu0
        %v542 = vadd.f32 %v321, %v541
        %v543 = vpop.f32.mrb[0].mxu0
        %544 = vmatprep.mubr.f32.mxu0 0.0
        %545 = vmatmul.mubr.f32.gmra.mrb[0].mxu0 %v361
        %v546 = vpop.f32.mrb[0].mxu0
        %v547 = vadd.f32 %v321, %v546
        %v548 = vpop.f32.mrb[0].mxu0
        %549 = vmatprep.mubr.f32.mxu0 0.0
        %550 = vmatmul.mubr.f32.gmra.mrb[0].mxu0 %v364
        %v551 = vpop.f32.mrb[0].mxu0
        %v552 = vadd.f32 %v321, %v551
        %v553 = vpop.f32.mrb[0].mxu0
        %554 = vmatprep.mubr.f32.mxu0 0.0
        %555 = vmatmul.mubr.f32.gmra.mrb[0].mxu0 %v367
        %v556 = vpop.f32.mrb[0].mxu0
        %v557 = vadd.f32 %v321, %v556
        %v558 = vpop.f32.mrb[0].mxu0
        %559 = vmatprep.mubr.f32.mxu0 0.0
        %560 = vmatmul.mubr.f32.gmra.mrb[0].mxu0 %v370
        %v561 = vpop.f32.mrb[0].mxu0
        %v562 = vadd.f32 %v321, %v561
        %v563 = vpop.f32.mrb[0].mxu0
        %564 = vmatprep.mubr.f32.mxu0 0.0
        %565 = vmatmul.mubr.f32.gmra.mrb[0].mxu0 %v373
        %v566 = vpop.f32.mrb[0].mxu0
        %v567 = vadd.f32 %v321, %v566
        %v568 = vpop.f32.mrb[0].mxu0
        %569 = vmatprep.mubr.f32.mxu0 0.0
        %570 = vmatmul.mubr.f32.gmra.mrb[0].mxu0 %v376
        %v571 = vpop.f32.mrb[0].mxu0
        %v572 = vadd.f32 %v321, %v571
        %v573 = vpop.f32.mrb[0].mxu0
        %574 = vmatprep.mubr.f32.mxu0 0.0
        %575 = vmatmul.mubr.f32.gmra.mrb[0].mxu0 %v379
        %v576 = vpop.f32.mrb[0].mxu0
        %v577 = vadd.f32 %v321, %v576
        %v578 = vpop.f32.mrb[0].mxu0
        %579 = vmatprep.mubr.f32.mxu0 0.0
        %580 = vmatmul.mubr.f32.gmra.mrb[0].mxu0 %v382
        %v581 = vpop.f32.mrb[0].mxu0
        %v582 = vadd.f32 %v321, %v581
        %v583 = vpop.f32.mrb[0].mxu0
        %584 = vmatprep.mubr.f32.mxu0 0.0
        %585 = vmatmul.mubr.f32.gmra.mrb[0].mxu0 %v385
        %v586 = vpop.f32.mrb[0].mxu0
        %v587 = vadd.f32 %v321, %v586
        %v588 = vpop.f32.mrb[0].mxu0
        %589 = vmatprep.mubr.f32.mxu0 0.0
        %590 = vmatmul.mubr.f32.gmra.mrb[0].mxu0 %v388
        %v591 = vpop.f32.mrb[0].mxu0
        %v592 = vadd.f32 %v321, %v591
        %v593 = vpop.f32.mrb[0].mxu0
        %594 = vmatprep.mubr.f32.mxu0 0.0
        %595 = vmatmul.mubr.f32.gmra.mrb[0].mxu0 %v391
        %v596 = vpop.f32.mrb[0].mxu0
        %v597 = vadd.f32 %v321, %v596
        %v598 = vpop.f32.mrb[0].mxu0
        %599 = vmatprep.mubr.f32.mxu0 0.0
        %600 = vmatmul.mubr.f32.gmra.mrb[0].mxu0 %v394
        %v601 = vpop.f32.mrb[0].mxu0
        %v602 = vadd.f32 %v321, %v601
        %v603 = vpop.f32.mrb[0].mxu0
        %604 = vmatprep.mubr.f32.mxu0 0.0
        %605 = vmatmul.mubr.f32.gmra.mrb[0].mxu0 %v397
        %v606 = vpop.f32.mrb[0].mxu0
        %v607 = vadd.f32 %v321, %v606
        %v608 = vpop.f32.mrb[0].mxu0
        %609 = vmatprep.mubr.f32.mxu0 0.0
        %610 = vmatmul.mubr.f32.gmra.mrb[0].mxu0 %v400
        %v611 = vpop.f32.mrb[0].mxu0
        %v612 = vadd.f32 %v321, %v611
        %v613 = vpop.f32.mrb[0].mxu0
        %614 = vmatprep.mubr.f32.mxu0 0.0
        %615 = vmatmul.mubr.f32.gmra.mrb[0].mxu0 %v403
        %v616 = vpop.f32.mrb[0].mxu0
        %v617 = vadd.f32 %v321, %v616
        %v618 = vpop.f32.mrb[0].mxu0
        %619 = vmatprep.mubr.f32.mxu0 0.0
        %620 = vmatmul.mubr.f32.gmra.mrb[0].mxu0 %v406
        %v621 = vpop.f32.mrb[0].mxu0
        %v622 = vadd.f32 %v321, %v621
        %v623 = vpop.f32.mrb[0].mxu0
        %624 = vmatprep.mubr.f32.mxu0 0.0
        %625 = vmatmul.mubr.f32.gmra.mrb[0].mxu0 %v409
        %v626 = vpop.f32.mrb[0].mxu0
        %v627 = vadd.f32 %v321, %v626
        %v628 = vpop.f32.mrb[0].mxu0
        %629 = vmatprep.mubr.f32.mxu0 0.0
        %630 = vmatmul.mubr.f32.gmra.mrb[0].mxu0 %v412
        %v631 = vpop.f32.mrb[0].mxu0
        %v632 = vadd.f32 %v321, %v631
        %v633 = vpop.f32.mrb[0].mxu0
        %634 = vmatprep.mubr.f32.mxu0 0.0
        %635 = vmatmul.mubr.f32.gmra.mrb[0].mxu0 %v415
        %v636 = vpop.f32.mrb[0].mxu0
        %v637 = vadd.f32 %v321, %v636
        %v638 = vpop.f32.mrb[0].mxu0
        %639 = vmatprep.mubr.f32.mxu0 0.0
        %640 = vmatmul.mubr.f32.gmra.mrb[0].mxu0 %v418
        %v641 = vpop.f32.mrb[0].mxu0
        %v642 = vadd.f32 %v321, %v641
        %v643 = vpop.f32.mrb[0].mxu0
        %644 = vdwg.mxu0
        %v645 = vmax.f32 %v487, 0.0
        %v646 = vmax.f32 %v492, 0.0
        %v647 = vmax.f32 %v497, 0.0
        %v648 = vmax.f32 %v502, 0.0
        %v649 = vmax.f32 %v507, 0.0
        %v650 = vmax.f32 %v512, 0.0
        %v651 = vmax.f32 %v517, 0.0
        %v652 = vmax.f32 %v522, 0.0
        %v653 = vmax.f32 %v527, 0.0
        %v654 = vmax.f32 %v532, 0.0
        %v655 = vmax.f32 %v537, 0.0
        %v656 = vmax.f32 %v542, 0.0
        %v657 = vmax.f32 %v547, 0.0
        %v658 = vmax.f32 %v552, 0.0
        %v659 = vmax.f32 %v557, 0.0
        %v660 = vmax.f32 %v562, 0.0
        %v661 = vmax.f32 %v567, 0.0
        %v662 = vmax.f32 %v572, 0.0
        %v663 = vmax.f32 %v577, 0.0
        %v664 = vmax.f32 %v582, 0.0
        %v665 = vmax.f32 %v587, 0.0
        %v666 = vmax.f32 %v592, 0.0
        %v667 = vmax.f32 %v597, 0.0
        %v668 = vmax.f32 %v602, 0.0
        %v669 = vmax.f32 %v607, 0.0
        %v670 = vmax.f32 %v612, 0.0
        %v671 = vmax.f32 %v617, 0.0
        %v672 = vmax.f32 %v622, 0.0
        %v673 = vmax.f32 %v627, 0.0
        %v674 = vmax.f32 %v632, 0.0
        %v675 = vmax.f32 %v637, 0.0
        %v676 = vmax.f32 %v642, 0.0
        %v677 = vld [vmem:[%s3] sm:$0xff]
        %v678 = vld [vmem:[%s3 + $0x8] sm:$0xff]
        %v679 = vld [vmem:[%s3 + $0x10] sm:$0xff]
        %v680 = vld [vmem:[%s3 + $0x18] sm:$0xff]
        %v681 = vld [vmem:[%s4] sm:$0x1]
        %v683 = vlaneseq
        %v684 = vshrl.u32 %v683, 7
        %v685 = vsub.s32 0, %v684
        %v686 = vrot.slane %v681, %v685
        %v689 = vsel %vm323, %v645, 0
        %v692 = vsel %vm323, %v646, 0
        %v695 = vsel %vm323, %v647, 0
        %v698 = vsel %vm323, %v648, 0
        %v701 = vsel %vm323, %v649, 0
        %v704 = vsel %vm323, %v650, 0
        %v707 = vsel %vm323, %v651, 0
        %v710 = vsel %vm323, %v652, 0
        %v713 = vsel %vm323, %v653, 0
        %v716 = vsel %vm323, %v654, 0
        %v719 = vsel %vm323, %v655, 0
        %v722 = vsel %vm323, %v656, 0
        %v725 = vsel %vm323, %v657, 0
        %v728 = vsel %vm323, %v658, 0
        %v731 = vsel %vm323, %v659, 0
        %v734 = vsel %vm323, %v660, 0
        %v737 = vsel %vm323, %v661, 0
        %v740 = vsel %vm323, %v662, 0
        %v743 = vsel %vm323, %v663, 0
        %v746 = vsel %vm323, %v664, 0
        %v749 = vsel %vm323, %v665, 0
        %v752 = vsel %vm323, %v666, 0
        %v755 = vsel %vm323, %v667, 0
        %v758 = vsel %vm323, %v668, 0
        %v761 = vsel %vm323, %v669, 0
        %v764 = vsel %vm323, %v670, 0
        %v767 = vsel %vm323, %v671, 0
        %v770 = vsel %vm323, %v672, 0
        %v773 = vsel %vm323, %v673, 0
        %v776 = vsel %vm323, %v674, 0
        %v779 = vsel %vm323, %v675, 0
        %v782 = vsel %vm323, %v676, 0
        %784 = vmatprep.subr.mxu0 0.0
        %785 = vmatpush1.msra.mxu0 %v677
        %786 = vmatprep.subr.mxu0 0.0
        %787 = vmatpush1.msra.mxu0 %v678
        %788 = vmatprep.subr.mxu0 0.0
        %789 = vmatpush1.msra.mxu0 %v679
        %790 = vmatprep.subr.mxu0 0.0
        %791 = vmatpush1.msra.mxu0 %v680
        %792 = vmatprep.subr.mxu0 0.0
        %793 = vmatpush1.msra.mxu0 0.0
        %794 = vmatprep.subr.mxu0 0.0
        %795 = vmatpush1.msra.mxu0 0.0
        %796 = vmatprep.subr.mxu0 0.0
        %797 = vmatpush1.msra.mxu0 0.0
        %798 = vmatprep.subr.mxu0 0.0
        %799 = vmatpush1.msra.mxu0 0.0
        %800 = vmatprep.subr.mxu0 0.0
        %801 = vmatpush1.msra.mxu0 0.0
        %802 = vmatprep.subr.mxu0 0.0
        %803 = vmatpush1.msra.mxu0 0.0
        %804 = vmatprep.subr.mxu0 0.0
        %805 = vmatpush1.msra.mxu0 0.0
        %806 = vmatprep.subr.mxu0 0.0
        %807 = vmatpush1.msra.mxu0 0.0
        %808 = vmatprep.subr.mxu0 0.0
        %809 = vmatpush1.msra.mxu0 0.0
        %810 = vmatprep.subr.mxu0 0.0
        %811 = vmatpush1.msra.mxu0 0.0
        %812 = vmatprep.subr.mxu0 0.0
        %813 = vmatpush1.msra.mxu0 0.0
        %814 = vmatprep.subr.mxu0 0.0
        %815 = vmatpush1.msra.mxu0 0.0
        %816 = vmatprep.subr.mxu0 0.0
        %817 = vmatpush1.msra.mxu0 0.0
        %818 = vmatprep.subr.mxu0 0.0
        %819 = vmatpush1.msra.mxu0 0.0
        %820 = vmatprep.subr.mxu0 0.0
        %821 = vmatpush1.msra.mxu0 0.0
        %822 = vmatprep.subr.mxu0 0.0
        %823 = vmatpush1.msra.mxu0 0.0
        %824 = vmatprep.subr.mxu0 0.0
        %825 = vmatpush1.msra.mxu0 0.0
        %826 = vmatprep.subr.mxu0 0.0
        %827 = vmatpush1.msra.mxu0 0.0
        %828 = vmatprep.subr.mxu0 0.0
        %829 = vmatpush1.msra.mxu0 0.0
        %830 = vmatprep.subr.mxu0 0.0
        %831 = vmatpush1.msra.mxu0 0.0
        %832 = vmatprep.subr.mxu0 0.0
        %833 = vmatpush1.msra.mxu0 0.0
        %834 = vmatprep.subr.mxu0 0.0
        %835 = vmatpush1.msra.mxu0 0.0
        %836 = vmatprep.subr.mxu0 0.0
        %837 = vmatpush1.msra.mxu0 0.0
        %838 = vmatprep.subr.mxu0 0.0
        %839 = vmatpush1.msra.mxu0 0.0
        %840 = vmatprep.subr.mxu0 0.0
        %841 = vmatpush1.msra.mxu0 0.0
        %842 = vmatprep.subr.mxu0 0.0
        %843 = vmatpush1.msra.mxu0 0.0
        %844 = vmatprep.subr.mxu0 0.0
        %845 = vmatpush1.msra.mxu0 0.0
        %846 = vmatprep.subr.mxu0 0.0
        %847 = vmatpush1.msra.mxu0 0.0
        %848 = vmatprep.mubr.f32.mxu0 0.0
        %849 = vmatmul.mubr.f32.gmra.mrb[0].mxu0 %v689
        %v850 = vpop.f32.mrb[0].mxu0
        %v851 = vadd.f32 %v686, %v850
        %v852 = vpop.f32.mrb[0].mxu0
        %853 = vmatprep.mubr.f32.mxu0 0.0
        %854 = vmatmul.mubr.f32.gmra.mrb[0].mxu0 %v692
        %v855 = vpop.f32.mrb[0].mxu0
        %v856 = vadd.f32 %v686, %v855
        %v857 = vpop.f32.mrb[0].mxu0
        %858 = vmatprep.mubr.f32.mxu0 0.0
        %859 = vmatmul.mubr.f32.gmra.mrb[0].mxu0 %v695
        %v860 = vpop.f32.mrb[0].mxu0
        %v861 = vadd.f32 %v686, %v860
        %v862 = vpop.f32.mrb[0].mxu0
        %863 = vmatprep.mubr.f32.mxu0 0.0
        %864 = vmatmul.mubr.f32.gmra.mrb[0].mxu0 %v698
        %v865 = vpop.f32.mrb[0].mxu0
        %v866 = vadd.f32 %v686, %v865
        %v867 = vpop.f32.mrb[0].mxu0
        %868 = vmatprep.mubr.f32.mxu0 0.0
        %869 = vmatmul.mubr.f32.gmra.mrb[0].mxu0 %v701
        %v870 = vpop.f32.mrb[0].mxu0
        %v871 = vadd.f32 %v686, %v870
        %v872 = vpop.f32.mrb[0].mxu0
        %873 = vmatprep.mubr.f32.mxu0 0.0
        %874 = vmatmul.mubr.f32.gmra.mrb[0].mxu0 %v704
        %v875 = vpop.f32.mrb[0].mxu0
        %v876 = vadd.f32 %v686, %v875
        %v877 = vpop.f32.mrb[0].mxu0
        %878 = vmatprep.mubr.f32.mxu0 0.0
        %879 = vmatmul.mubr.f32.gmra.mrb[0].mxu0 %v707
        %v880 = vpop.f32.mrb[0].mxu0
        %v881 = vadd.f32 %v686, %v880
        %v882 = vpop.f32.mrb[0].mxu0
        %883 = vmatprep.mubr.f32.mxu0 0.0
        %884 = vmatmul.mubr.f32.gmra.mrb[0].mxu0 %v710
        %v885 = vpop.f32.mrb[0].mxu0
        %v886 = vadd.f32 %v686, %v885
        %v887 = vpop.f32.mrb[0].mxu0
        %888 = vmatprep.mubr.f32.mxu0 0.0
        %889 = vmatmul.mubr.f32.gmra.mrb[0].mxu0 %v713
        %v890 = vpop.f32.mrb[0].mxu0
        %v891 = vadd.f32 %v686, %v890
        %v892 = vpop.f32.mrb[0].mxu0
        %893 = vmatprep.mubr.f32.mxu0 0.0
        %894 = vmatmul.mubr.f32.gmra.mrb[0].mxu0 %v716
        %v895 = vpop.f32.mrb[0].mxu0
        %v896 = vadd.f32 %v686, %v895
        %v897 = vpop.f32.mrb[0].mxu0
        %898 = vmatprep.mubr.f32.mxu0 0.0
        %899 = vmatmul.mubr.f32.gmra.mrb[0].mxu0 %v719
        %v900 = vpop.f32.mrb[0].mxu0
        %v901 = vadd.f32 %v686, %v900
        %v902 = vpop.f32.mrb[0].mxu0
        %903 = vmatprep.mubr.f32.mxu0 0.0
        %904 = vmatmul.mubr.f32.gmra.mrb[0].mxu0 %v722
        %v905 = vpop.f32.mrb[0].mxu0
        %v906 = vadd.f32 %v686, %v905
        %v907 = vpop.f32.mrb[0].mxu0
        %908 = vmatprep.mubr.f32.mxu0 0.0
        %909 = vmatmul.mubr.f32.gmra.mrb[0].mxu0 %v725
        %v910 = vpop.f32.mrb[0].mxu0
        %v911 = vadd.f32 %v686, %v910
        %v912 = vpop.f32.mrb[0].mxu0
        %913 = vmatprep.mubr.f32.mxu0 0.0
        %914 = vmatmul.mubr.f32.gmra.mrb[0].mxu0 %v728
        %v915 = vpop.f32.mrb[0].mxu0
        %v916 = vadd.f32 %v686, %v915
        %v917 = vpop.f32.mrb[0].mxu0
        %918 = vmatprep.mubr.f32.mxu0 0.0
        %919 = vmatmul.mubr.f32.gmra.mrb[0].mxu0 %v731
        %v920 = vpop.f32.mrb[0].mxu0
        %v921 = vadd.f32 %v686, %v920
        %v922 = vpop.f32.mrb[0].mxu0
        %923 = vmatprep.mubr.f32.mxu0 0.0
        %924 = vmatmul.mubr.f32.gmra.mrb[0].mxu0 %v734
        %v925 = vpop.f32.mrb[0].mxu0
        %v926 = vadd.f32 %v686, %v925
        %v927 = vpop.f32.mrb[0].mxu0
        %928 = vmatprep.mubr.f32.mxu0 0.0
        %929 = vmatmul.mubr.f32.gmra.mrb[0].mxu0 %v737
        %v930 = vpop.f32.mrb[0].mxu0
        %v931 = vadd.f32 %v686, %v930
        %v932 = vpop.f32.mrb[0].mxu0
        %933 = vmatprep.mubr.f32.mxu0 0.0
        %934 = vmatmul.mubr.f32.gmra.mrb[0].mxu0 %v740
        %v935 = vpop.f32.mrb[0].mxu0
        %v936 = vadd.f32 %v686, %v935
        %v937 = vpop.f32.mrb[0].mxu0
        %938 = vmatprep.mubr.f32.mxu0 0.0
        %939 = vmatmul.mubr.f32.gmra.mrb[0].mxu0 %v743
        %v940 = vpop.f32.mrb[0].mxu0
        %v941 = vadd.f32 %v686, %v940
        %v942 = vpop.f32.mrb[0].mxu0
        %943 = vmatprep.mubr.f32.mxu0 0.0
        %944 = vmatmul.mubr.f32.gmra.mrb[0].mxu0 %v746
        %v945 = vpop.f32.mrb[0].mxu0
        %v946 = vadd.f32 %v686, %v945
        %v947 = vpop.f32.mrb[0].mxu0
        %948 = vmatprep.mubr.f32.mxu0 0.0
        %949 = vmatmul.mubr.f32.gmra.mrb[0].mxu0 %v749
        %v950 = vpop.f32.mrb[0].mxu0
        %v951 = vadd.f32 %v686, %v950
        %v952 = vpop.f32.mrb[0].mxu0
        %953 = vmatprep.mubr.f32.mxu0 0.0
        %954 = vmatmul.mubr.f32.gmra.mrb[0].mxu0 %v752
        %v955 = vpop.f32.mrb[0].mxu0
        %v956 = vadd.f32 %v686, %v955
        %v957 = vpop.f32.mrb[0].mxu0
        %958 = vmatprep.mubr.f32.mxu0 0.0
        %959 = vmatmul.mubr.f32.gmra.mrb[0].mxu0 %v755
        %v960 = vpop.f32.mrb[0].mxu0
        %v961 = vadd.f32 %v686, %v960
        %v962 = vpop.f32.mrb[0].mxu0
        %963 = vmatprep.mubr.f32.mxu0 0.0
        %964 = vmatmul.mubr.f32.gmra.mrb[0].mxu0 %v758
        %v965 = vpop.f32.mrb[0].mxu0
        %v966 = vadd.f32 %v686, %v965
        %v967 = vpop.f32.mrb[0].mxu0
        %968 = vmatprep.mubr.f32.mxu0 0.0
        %969 = vmatmul.mubr.f32.gmra.mrb[0].mxu0 %v761
        %v970 = vpop.f32.mrb[0].mxu0
        %v971 = vadd.f32 %v686, %v970
        %v972 = vpop.f32.mrb[0].mxu0
        %973 = vmatprep.mubr.f32.mxu0 0.0
        %974 = vmatmul.mubr.f32.gmra.mrb[0].mxu0 %v764
        %v975 = vpop.f32.mrb[0].mxu0
        %v976 = vadd.f32 %v686, %v975
        %v977 = vpop.f32.mrb[0].mxu0
        %978 = vmatprep.mubr.f32.mxu0 0.0
        %979 = vmatmul.mubr.f32.gmra.mrb[0].mxu0 %v767
        %v980 = vpop.f32.mrb[0].mxu0
        %v981 = vadd.f32 %v686, %v980
        %v982 = vpop.f32.mrb[0].mxu0
        %983 = vmatprep.mubr.f32.mxu0 0.0
        %984 = vmatmul.mubr.f32.gmra.mrb[0].mxu0 %v770
        %v985 = vpop.f32.mrb[0].mxu0
        %v986 = vadd.f32 %v686, %v985
        %v987 = vpop.f32.mrb[0].mxu0
        %988 = vmatprep.mubr.f32.mxu0 0.0
        %989 = vmatmul.mubr.f32.gmra.mrb[0].mxu0 %v773
        %v990 = vpop.f32.mrb[0].mxu0
        %v991 = vadd.f32 %v686, %v990
        %v992 = vpop.f32.mrb[0].mxu0
        %993 = vmatprep.mubr.f32.mxu0 0.0
        %994 = vmatmul.mubr.f32.gmra.mrb[0].mxu0 %v776
        %v995 = vpop.f32.mrb[0].mxu0
        %v996 = vadd.f32 %v686, %v995
        %v997 = vpop.f32.mrb[0].mxu0
        %998 = vmatprep.mubr.f32.mxu0 0.0
        %999 = vmatmul.mubr.f32.gmra.mrb[0].mxu0 %v779
        %v1000 = vpop.f32.mrb[0].mxu0
        %v1001 = vadd.f32 %v686, %v1000
        %v1002 = vpop.f32.mrb[0].mxu0
        %1003 = vmatprep.mubr.f32.mxu0 0.0
        %1004 = vmatmul.mubr.f32.gmra.mrb[0].mxu0 %v782
        %v1005 = vpop.f32.mrb[0].mxu0
        %v1006 = vadd.f32 %v686, %v1005
        %v1007 = vpop.f32.mrb[0].mxu0
        %1008 = vdwg.mxu0
        %v1009 = vmax.f32 %v851, 0.0
        %v1010 = vmax.f32 %v856, 0.0
        %v1011 = vmax.f32 %v861, 0.0
        %v1012 = vmax.f32 %v866, 0.0
        %v1013 = vmax.f32 %v871, 0.0
        %v1014 = vmax.f32 %v876, 0.0
        %v1015 = vmax.f32 %v881, 0.0
        %v1016 = vmax.f32 %v886, 0.0
        %v1017 = vmax.f32 %v891, 0.0
        %v1018 = vmax.f32 %v896, 0.0
        %v1019 = vmax.f32 %v901, 0.0
        %v1020 = vmax.f32 %v906, 0.0
        %v1021 = vmax.f32 %v911, 0.0
        %v1022 = vmax.f32 %v916, 0.0
        %v1023 = vmax.f32 %v921, 0.0
        %v1024 = vmax.f32 %v926, 0.0
        %v1025 = vmax.f32 %v931, 0.0
        %v1026 = vmax.f32 %v936, 0.0
        %v1027 = vmax.f32 %v941, 0.0
        %v1028 = vmax.f32 %v946, 0.0
        %v1029 = vmax.f32 %v951, 0.0
        %v1030 = vmax.f32 %v956, 0.0
        %v1031 = vmax.f32 %v961, 0.0
        %v1032 = vmax.f32 %v966, 0.0
        %v1033 = vmax.f32 %v971, 0.0
        %v1034 = vmax.f32 %v976, 0.0
        %v1035 = vmax.f32 %v981, 0.0
        %v1036 = vmax.f32 %v986, 0.0
        %v1037 = vmax.f32 %v991, 0.0
        %v1038 = vmax.f32 %v996, 0.0
        %v1039 = vmax.f32 %v1001, 0.0
        %v1040 = vmax.f32 %v1006, 0.0
        %v1041 = vld [vmem:[%s5] sm:$0xff]
        %v1042 = vld [vmem:[%s5 + $0x8] sm:$0xff]
        %v1043 = vld [vmem:[%s5 + $0x10] sm:$0xff]
        %v1044 = vld [vmem:[%s5 + $0x18] sm:$0xff]
        %v1045 = vld [vmem:[%s6] sm:$0x1]
        %v1047 = vlaneseq
        %v1048 = vshrl.u32 %v1047, 7
        %v1049 = vsub.s32 0, %v1048
        %v1050 = vrot.slane %v1045, %v1049
        %v1053 = vsel %vm323, %v1009, 0
        %v1056 = vsel %vm323, %v1010, 0
        %v1059 = vsel %vm323, %v1011, 0
        %v1062 = vsel %vm323, %v1012, 0
        %v1065 = vsel %vm323, %v1013, 0
        %v1068 = vsel %vm323, %v1014, 0
        %v1071 = vsel %vm323, %v1015, 0
        %v1074 = vsel %vm323, %v1016, 0
        %v1077 = vsel %vm323, %v1017, 0
        %v1080 = vsel %vm323, %v1018, 0
        %v1083 = vsel %vm323, %v1019, 0
        %v1086 = vsel %vm323, %v1020, 0
        %v1089 = vsel %vm323, %v1021, 0
        %v1092 = vsel %vm323, %v1022, 0
        %v1095 = vsel %vm323, %v1023, 0
        %v1098 = vsel %vm323, %v1024, 0
        %v1101 = vsel %vm323, %v1025, 0
        %v1104 = vsel %vm323, %v1026, 0
        %v1107 = vsel %vm323, %v1027, 0
        %v1110 = vsel %vm323, %v1028, 0
        %v1113 = vsel %vm323, %v1029, 0
        %v1116 = vsel %vm323, %v1030, 0
        %v1119 = vsel %vm323, %v1031, 0
        %v1122 = vsel %vm323, %v1032, 0
        %v1125 = vsel %vm323, %v1033, 0
        %v1128 = vsel %vm323, %v1034, 0
        %v1131 = vsel %vm323, %v1035, 0
        %v1134 = vsel %vm323, %v1036, 0
        %v1137 = vsel %vm323, %v1037, 0
        %v1140 = vsel %vm323, %v1038, 0
        %v1143 = vsel %vm323, %v1039, 0
        %v1146 = vsel %vm323, %v1040, 0
        %1148 = vmatprep.subr.mxu0 0.0
        %1149 = vmatpush1.msra.mxu0 %v1041
        %1150 = vmatprep.subr.mxu0 0.0
        %1151 = vmatpush1.msra.mxu0 %v1042
        %1152 = vmatprep.subr.mxu0 0.0
        %1153 = vmatpush1.msra.mxu0 %v1043
        %1154 = vmatprep.subr.mxu0 0.0
        %1155 = vmatpush1.msra.mxu0 %v1044
        %1156 = vmatprep.subr.mxu0 0.0
        %1157 = vmatpush1.msra.mxu0 0.0
        %1158 = vmatprep.subr.mxu0 0.0
        %1159 = vmatpush1.msra.mxu0 0.0
        %1160 = vmatprep.subr.mxu0 0.0
        %1161 = vmatpush1.msra.mxu0 0.0
        %1162 = vmatprep.subr.mxu0 0.0
        %1163 = vmatpush1.msra.mxu0 0.0
        %1164 = vmatprep.subr.mxu0 0.0
        %1165 = vmatpush1.msra.mxu0 0.0
        %1166 = vmatprep.subr.mxu0 0.0
        %1167 = vmatpush1.msra.mxu0 0.0
        %1168 = vmatprep.subr.mxu0 0.0
        %1169 = vmatpush1.msra.mxu0 0.0
        %1170 = vmatprep.subr.mxu0 0.0
        %1171 = vmatpush1.msra.mxu0 0.0
        %1172 = vmatprep.subr.mxu0 0.0
        %1173 = vmatpush1.msra.mxu0 0.0
        %1174 = vmatprep.subr.mxu0 0.0
        %1175 = vmatpush1.msra.mxu0 0.0
        %1176 = vmatprep.subr.mxu0 0.0
        %1177 = vmatpush1.msra.mxu0 0.0
        %1178 = vmatprep.subr.mxu0 0.0
        %1179 = vmatpush1.msra.mxu0 0.0
        %1180 = vmatprep.subr.mxu0 0.0
        %1181 = vmatpush1.msra.mxu0 0.0
        %1182 = vmatprep.subr.mxu0 0.0
        %1183 = vmatpush1.msra.mxu0 0.0
        %1184 = vmatprep.subr.mxu0 0.0
        %1185 = vmatpush1.msra.mxu0 0.0
        %1186 = vmatprep.subr.mxu0 0.0
        %1187 = vmatpush1.msra.mxu0 0.0
        %1188 = vmatprep.subr.mxu0 0.0
        %1189 = vmatpush1.msra.mxu0 0.0
        %1190 = vmatprep.subr.mxu0 0.0
        %1191 = vmatpush1.msra.mxu0 0.0
        %1192 = vmatprep.subr.mxu0 0.0
        %1193 = vmatpush1.msra.mxu0 0.0
        %1194 = vmatprep.subr.mxu0 0.0
        %1195 = vmatpush1.msra.mxu0 0.0
        %1196 = vmatprep.subr.mxu0 0.0
        %1197 = vmatpush1.msra.mxu0 0.0
        %1198 = vmatprep.subr.mxu0 0.0
        %1199 = vmatpush1.msra.mxu0 0.0
        %1200 = vmatprep.subr.mxu0 0.0
        %1201 = vmatpush1.msra.mxu0 0.0
        %1202 = vmatprep.subr.mxu0 0.0
        %1203 = vmatpush1.msra.mxu0 0.0
        %1204 = vmatprep.subr.mxu0 0.0
        %1205 = vmatpush1.msra.mxu0 0.0
        %1206 = vmatprep.subr.mxu0 0.0
        %1207 = vmatpush1.msra.mxu0 0.0
        %1208 = vmatprep.subr.mxu0 0.0
        %1209 = vmatpush1.msra.mxu0 0.0
        %1210 = vmatprep.subr.mxu0 0.0
        %1211 = vmatpush1.msra.mxu0 0.0
        %1212 = vmatprep.mubr.f32.mxu0 0.0
        %1213 = vmatmul.mubr.f32.gmra.mrb[0].mxu0 %v1053
        %v1214 = vpop.f32.mrb[0].mxu0
        %v1215 = vadd.f32 %v1050, %v1214
        %v1216 = vpop.f32.mrb[0].mxu0
        %1217 = vmatprep.mubr.f32.mxu0 0.0
        %1218 = vmatmul.mubr.f32.gmra.mrb[0].mxu0 %v1056
        %v1219 = vpop.f32.mrb[0].mxu0
        %v1220 = vadd.f32 %v1050, %v1219
        %v1221 = vpop.f32.mrb[0].mxu0
        %1222 = vmatprep.mubr.f32.mxu0 0.0
        %1223 = vmatmul.mubr.f32.gmra.mrb[0].mxu0 %v1059
        %v1224 = vpop.f32.mrb[0].mxu0
        %v1225 = vadd.f32 %v1050, %v1224
        %v1226 = vpop.f32.mrb[0].mxu0
        %1227 = vmatprep.mubr.f32.mxu0 0.0
        %1228 = vmatmul.mubr.f32.gmra.mrb[0].mxu0 %v1062
        %v1229 = vpop.f32.mrb[0].mxu0
        %v1230 = vadd.f32 %v1050, %v1229
        %v1231 = vpop.f32.mrb[0].mxu0
        %1232 = vmatprep.mubr.f32.mxu0 0.0
        %1233 = vmatmul.mubr.f32.gmra.mrb[0].mxu0 %v1065
        %v1234 = vpop.f32.mrb[0].mxu0
        %v1235 = vadd.f32 %v1050, %v1234
        %v1236 = vpop.f32.mrb[0].mxu0
        %1237 = vmatprep.mubr.f32.mxu0 0.0
        %1238 = vmatmul.mubr.f32.gmra.mrb[0].mxu0 %v1068
        %v1239 = vpop.f32.mrb[0].mxu0
        %v1240 = vadd.f32 %v1050, %v1239
        %v1241 = vpop.f32.mrb[0].mxu0
        %1242 = vmatprep.mubr.f32.mxu0 0.0
        %1243 = vmatmul.mubr.f32.gmra.mrb[0].mxu0 %v1071
        %v1244 = vpop.f32.mrb[0].mxu0
        %v1245 = vadd.f32 %v1050, %v1244
        %v1246 = vpop.f32.mrb[0].mxu0
        %1247 = vmatprep.mubr.f32.mxu0 0.0
        %1248 = vmatmul.mubr.f32.gmra.mrb[0].mxu0 %v1074
        %v1249 = vpop.f32.mrb[0].mxu0
        %v1250 = vadd.f32 %v1050, %v1249
        %v1251 = vpop.f32.mrb[0].mxu0
        %1252 = vmatprep.mubr.f32.mxu0 0.0
        %1253 = vmatmul.mubr.f32.gmra.mrb[0].mxu0 %v1077
        %v1254 = vpop.f32.mrb[0].mxu0
        %v1255 = vadd.f32 %v1050, %v1254
        %v1256 = vpop.f32.mrb[0].mxu0
        %1257 = vmatprep.mubr.f32.mxu0 0.0
        %1258 = vmatmul.mubr.f32.gmra.mrb[0].mxu0 %v1080
        %v1259 = vpop.f32.mrb[0].mxu0
        %v1260 = vadd.f32 %v1050, %v1259
        %v1261 = vpop.f32.mrb[0].mxu0
        %1262 = vmatprep.mubr.f32.mxu0 0.0
        %1263 = vmatmul.mubr.f32.gmra.mrb[0].mxu0 %v1083
        %v1264 = vpop.f32.mrb[0].mxu0
        %v1265 = vadd.f32 %v1050, %v1264
        %v1266 = vpop.f32.mrb[0].mxu0
        %1267 = vmatprep.mubr.f32.mxu0 0.0
        %1268 = vmatmul.mubr.f32.gmra.mrb[0].mxu0 %v1086
        %v1269 = vpop.f32.mrb[0].mxu0
        %v1270 = vadd.f32 %v1050, %v1269
        %v1271 = vpop.f32.mrb[0].mxu0
        %1272 = vmatprep.mubr.f32.mxu0 0.0
        %1273 = vmatmul.mubr.f32.gmra.mrb[0].mxu0 %v1089
        %v1274 = vpop.f32.mrb[0].mxu0
        %v1275 = vadd.f32 %v1050, %v1274
        %v1276 = vpop.f32.mrb[0].mxu0
        %1277 = vmatprep.mubr.f32.mxu0 0.0
        %1278 = vmatmul.mubr.f32.gmra.mrb[0].mxu0 %v1092
        %v1279 = vpop.f32.mrb[0].mxu0
        %v1280 = vadd.f32 %v1050, %v1279
        %v1281 = vpop.f32.mrb[0].mxu0
        %1282 = vmatprep.mubr.f32.mxu0 0.0
        %1283 = vmatmul.mubr.f32.gmra.mrb[0].mxu0 %v1095
        %v1284 = vpop.f32.mrb[0].mxu0
        %v1285 = vadd.f32 %v1050, %v1284
        %v1286 = vpop.f32.mrb[0].mxu0
        %1287 = vmatprep.mubr.f32.mxu0 0.0
        %1288 = vmatmul.mubr.f32.gmra.mrb[0].mxu0 %v1098
        %v1289 = vpop.f32.mrb[0].mxu0
        %v1290 = vadd.f32 %v1050, %v1289
        %v1291 = vpop.f32.mrb[0].mxu0
        %1292 = vmatprep.mubr.f32.mxu0 0.0
        %1293 = vmatmul.mubr.f32.gmra.mrb[0].mxu0 %v1101
        %v1294 = vpop.f32.mrb[0].mxu0
        %v1295 = vadd.f32 %v1050, %v1294
        %v1296 = vpop.f32.mrb[0].mxu0
        %1297 = vmatprep.mubr.f32.mxu0 0.0
        %1298 = vmatmul.mubr.f32.gmra.mrb[0].mxu0 %v1104
        %v1299 = vpop.f32.mrb[0].mxu0
        %v1300 = vadd.f32 %v1050, %v1299
        %v1301 = vpop.f32.mrb[0].mxu0
        %1302 = vmatprep.mubr.f32.mxu0 0.0
        %1303 = vmatmul.mubr.f32.gmra.mrb[0].mxu0 %v1107
        %v1304 = vpop.f32.mrb[0].mxu0
        %v1305 = vadd.f32 %v1050, %v1304
        %v1306 = vpop.f32.mrb[0].mxu0
        %1307 = vmatprep.mubr.f32.mxu0 0.0
        %1308 = vmatmul.mubr.f32.gmra.mrb[0].mxu0 %v1110
        %v1309 = vpop.f32.mrb[0].mxu0
        %v1310 = vadd.f32 %v1050, %v1309
        %v1311 = vpop.f32.mrb[0].mxu0
        %1312 = vmatprep.mubr.f32.mxu0 0.0
        %1313 = vmatmul.mubr.f32.gmra.mrb[0].mxu0 %v1113
        %v1314 = vpop.f32.mrb[0].mxu0
        %v1315 = vadd.f32 %v1050, %v1314
        %v1316 = vpop.f32.mrb[0].mxu0
        %1317 = vmatprep.mubr.f32.mxu0 0.0
        %1318 = vmatmul.mubr.f32.gmra.mrb[0].mxu0 %v1116
        %v1319 = vpop.f32.mrb[0].mxu0
        %v1320 = vadd.f32 %v1050, %v1319
        %v1321 = vpop.f32.mrb[0].mxu0
        %1322 = vmatprep.mubr.f32.mxu0 0.0
        %1323 = vmatmul.mubr.f32.gmra.mrb[0].mxu0 %v1119
        %v1324 = vpop.f32.mrb[0].mxu0
        %v1325 = vadd.f32 %v1050, %v1324
        %v1326 = vpop.f32.mrb[0].mxu0
        %1327 = vmatprep.mubr.f32.mxu0 0.0
        %1328 = vmatmul.mubr.f32.gmra.mrb[0].mxu0 %v1122
        %v1329 = vpop.f32.mrb[0].mxu0
        %v1330 = vadd.f32 %v1050, %v1329
        %v1331 = vpop.f32.mrb[0].mxu0
        %1332 = vmatprep.mubr.f32.mxu0 0.0
        %1333 = vmatmul.mubr.f32.gmra.mrb[0].mxu0 %v1125
        %v1334 = vpop.f32.mrb[0].mxu0
        %v1335 = vadd.f32 %v1050, %v1334
        %v1336 = vpop.f32.mrb[0].mxu0
        %1337 = vmatprep.mubr.f32.mxu0 0.0
        %1338 = vmatmul.mubr.f32.gmra.mrb[0].mxu0 %v1128
        %v1339 = vpop.f32.mrb[0].mxu0
        %v1340 = vadd.f32 %v1050, %v1339
        %v1341 = vpop.f32.mrb[0].mxu0
        %1342 = vmatprep.mubr.f32.mxu0 0.0
        %1343 = vmatmul.mubr.f32.gmra.mrb[0].mxu0 %v1131
        %v1344 = vpop.f32.mrb[0].mxu0
        %v1345 = vadd.f32 %v1050, %v1344
        %v1346 = vpop.f32.mrb[0].mxu0
        %1347 = vmatprep.mubr.f32.mxu0 0.0
        %1348 = vmatmul.mubr.f32.gmra.mrb[0].mxu0 %v1134
        %v1349 = vpop.f32.mrb[0].mxu0
        %v1350 = vadd.f32 %v1050, %v1349
        %v1351 = vpop.f32.mrb[0].mxu0
        %1352 = vmatprep.mubr.f32.mxu0 0.0
        %1353 = vmatmul.mubr.f32.gmra.mrb[0].mxu0 %v1137
        %v1354 = vpop.f32.mrb[0].mxu0
        %v1355 = vadd.f32 %v1050, %v1354
        %v1356 = vpop.f32.mrb[0].mxu0
        %1357 = vmatprep.mubr.f32.mxu0 0.0
        %1358 = vmatmul.mubr.f32.gmra.mrb[0].mxu0 %v1140
        %v1359 = vpop.f32.mrb[0].mxu0
        %v1360 = vadd.f32 %v1050, %v1359
        %v1361 = vpop.f32.mrb[0].mxu0
        %1362 = vmatprep.mubr.f32.mxu0 0.0
        %1363 = vmatmul.mubr.f32.gmra.mrb[0].mxu0 %v1143
        %v1364 = vpop.f32.mrb[0].mxu0
        %v1365 = vadd.f32 %v1050, %v1364
        %v1366 = vpop.f32.mrb[0].mxu0
        %1367 = vmatprep.mubr.f32.mxu0 0.0
        %1368 = vmatmul.mubr.f32.gmra.mrb[0].mxu0 %v1146
        %v1369 = vpop.f32.mrb[0].mxu0
        %v1370 = vadd.f32 %v1050, %v1369
        %v1371 = vpop.f32.mrb[0].mxu0
        %1372 = vdwg.mxu0
        %1373 = vst [vmem:[%s272] sm:$0xff] %v1215
        %1374 = vst [vmem:[%s272 + $0x8] sm:$0xff] %v1220
        %1375 = vst [vmem:[%s272 + $0x10] sm:$0xff] %v1225
        %1376 = vst [vmem:[%s272 + $0x18] sm:$0xff] %v1230
        %1377 = vst [vmem:[%s272 + $0x20] sm:$0xff] %v1235
        %1378 = vst [vmem:[%s272 + $0x28] sm:$0xff] %v1240
        %1379 = vst [vmem:[%s272 + $0x30] sm:$0xff] %v1245
        %1380 = vst [vmem:[%s272 + $0x38] sm:$0xff] %v1250
        %1381 = vst [vmem:[%s272 + $0x40] sm:$0xff] %v1255
        %1382 = vst [vmem:[%s272 + $0x48] sm:$0xff] %v1260
        %1383 = vst [vmem:[%s272 + $0x50] sm:$0xff] %v1265
        %1384 = vst [vmem:[%s272 + $0x58] sm:$0xff] %v1270
        %1385 = vst [vmem:[%s272 + $0x60] sm:$0xff] %v1275
        %1386 = vst [vmem:[%s272 + $0x68] sm:$0xff] %v1280
        %1387 = vst [vmem:[%s272 + $0x70] sm:$0xff] %v1285
        %1388 = vst [vmem:[%s272 + $0x78] sm:$0xff] %v1290
        %1389 = vst [vmem:[%s272 + $0x80] sm:$0xff] %v1295
        %1390 = vst [vmem:[%s272 + $0x88] sm:$0xff] %v1300
        %1391 = vst [vmem:[%s272 + $0x90] sm:$0xff] %v1305
        %1392 = vst [vmem:[%s272 + $0x98] sm:$0xff] %v1310
        %1393 = vst [vmem:[%s272 + $0xa0] sm:$0xff] %v1315
        %1394 = vst [vmem:[%s272 + $0xa8] sm:$0xff] %v1320
        %1395 = vst [vmem:[%s272 + $0xb0] sm:$0xff] %v1325
        %1396 = vst [vmem:[%s272 + $0xb8] sm:$0xff] %v1330
        %1397 = vst [vmem:[%s272 + $0xc0] sm:$0xff] %v1335
        %1398 = vst [vmem:[%s272 + $0xc8] sm:$0xff] %v1340
        %1399 = vst [vmem:[%s272 + $0xd0] sm:$0xff] %v1345
        %1400 = vst [vmem:[%s272 + $0xd8] sm:$0xff] %v1350
        %1401 = vst [vmem:[%s272 + $0xe0] sm:$0xff] %v1355
        %1402 = vst [vmem:[%s272 + $0xe8] sm:$0xff] %v1360
        %1403 = vst [vmem:[%s272 + $0xf0] sm:$0xff] %v1365
        %1404 = vst [vmem:[%s272 + $0xf8] sm:$0xff] %v1370
        %s1405 = sand.u32 %s181, 1
        %s1406 = scalar_lea.sflag [#allocation3], %s1405
        %s1407 = sand.u32 %s181, 1
        %s1408 = smul.addr %s1407, 256
        %s1409 = scalar_lea.vmem [#allocation2], %s1408
        // Predicated region
        $region49: #{tpu_custom_call.1} parent=47 // pred_check
          %p1410 = pneg %p191
        $region50: #{tpu_custom_call.1} parent=47 // pred_check_branch
          %1412 = sbr.rel (%p1410) target = $region52
        $region51: #{tpu_custom_call.1} parent=47 // pred_region
          %s1413 = smul.u32 32, %s21
          %s1415 = ssub.s32 4096, 4096
          %1416 = vsyncadd %s1406, %s1415
          %s1417 = smul.addr %s1413, 128
          %s1418 = scalar_lea.hbm %s7, %s1417
          %s1419 = sshll.u32 %s1409, 4
          %s1420 = int_to_ptr.vmem [resolvable:$true] %s1419
          %1425 = dma.vmem_to_hbm [thread:$0]  %s1420, 4096, %s1418, %s1406, 128, 128, 8
        $region52: #{tpu_custom_call.1} parent=47 // pred_fallthru
          _
      $region48: #{tpu_custom_call.1} parent=5 // pred_fallthru
        _
      %p1426 = scmp.le.s32.totalorder 2, %s16
      // Predicated region
      $region53: #{tpu_custom_call.1} parent=5 // pred_check
        %p1427 = pneg %p1426
      $region54: #{tpu_custom_call.1} parent=5 // pred_check_branch
        %1429 = sbr.rel (%p1427) target = $region56
      $region55: #{tpu_custom_call.1} parent=5 // pred_region
        %s1430 = ssub.s32 %s16, 2
        // Predicated region
        $region57: #{tpu_custom_call.1} parent=55 // pred_check
          %p1431 = pneg %p197
        $region58: #{tpu_custom_call.1} parent=55 // pred_check_branch
          %1433 = sbr.rel (%p1431) target = $region60
        $region59: #{tpu_custom_call.1} parent=55 // pred_region
          %s1434 = sand.u32 %s182, 1
          %s1435 = scalar_lea.sflag [#allocation3], %s1434
          %s1436 = sand.u32 %s182, 1
          %s1437 = smul.addr %s1436, 256
          %s1438 = scalar_lea.vmem [#allocation2], %s1437
          %1439 = dma.done %s1435, 4096
        $region60: #{tpu_custom_call.1} parent=55 // pred_fallthru
          _
      $region56: #{tpu_custom_call.1} parent=5 // pred_fallthru
        _
    $region6: #{tpu_custom_call.1} parent=1 // loop_footer
      %s20 = sadd.s32 1, %s16
    $region7: #{tpu_custom_call.1} parent=1 // loop_footer_branch
      %15 = sbr.rel target = $region3
    $region8: #{tpu_custom_call.1} parent=1 // loop_exit
      _
    %1440 = vsyncpa [#allocation3], 1
    %s1441 = scalar_lea.sflag [#allocation3], 1
    %1442 = vsyncpa %s1441, 1

</llo_original>
